<compile_context>
chip_gen: v6e
topology: v6e:2x2x1
jax: 0.10.0
libtpu: 0.0.40
codegen_flags: <defaults>
</compile_context>

<pallas_src>
import jax
import jax.numpy as jnp
from jax.experimental import pallas as pl
from jax.experimental.pallas import tpu as pltpu


def _round_up(x, m):
    return (x + m - 1) // m * m


def _linear_lif_kernel(x_ref, w_ref, thr_ref, o_ref, acc_ref):
    # x_ref: (tm, tk) bf16   w_ref: (tn, tk) bf16 (PyTorch (H, D) layout tile)
    # thr_ref: (1, tn) f32   o_ref: (tm, tn) f32   acc_ref: (tm, tn) f32 scratch
    @pl.when(pl.program_id(2) == 0)
    def _init():
        acc_ref[...] = jnp.zeros_like(acc_ref)

    # Contract on the shared D axis directly (no pre-transposed weight needed).
    acc_ref[...] += jax.lax.dot_general(
        x_ref[...],
        w_ref[...],
        dimension_numbers=(((1,), (1,)), ((), ())),
        preferred_element_type=jnp.float32,
    )

    @pl.when(pl.program_id(2) == pl.num_programs(2) - 1)
    def _finish():
        # LIF charge + spike folded into one compare:
        #   spike = (v_reset + (x@w.T + b)/tau >= v_threshold)
        #         = (x@w.T >= (v_threshold - v_reset)*tau - b) = (acc >= thr)
        o_ref[...] = (acc_ref[...] >= thr_ref[...]).astype(o_ref.dtype)


def bayesian_linear_forward(x, w1, b1, *, tau, v_threshold, v_reset):
    """x: (B, ...) any trailing shape; w1: (H, D) PyTorch layout; b1: (H,).
    Returns spikes (B, H) float32."""
    B = x.shape[0]
    x2d = x.reshape(B, -1)
    D = x2d.shape[1]
    H = w1.shape[0]

    # Fold bias and LIF constants into one per-column threshold.
    thr = (float(v_threshold) - float(v_reset)) * float(tau) - b1.astype(jnp.float32)

    # Tile sizes: 128-wide lane-dense N tile (v5e MXU native, fine on v6e/v7x),
    # M tile = padded batch (>= 8 sublanes), K tile <= 512.
    tn = 128
    tm = min(128, _round_up(max(B, 8), 8))
    tk = min(512, _round_up(D, 128))

    Bp = _round_up(B, tm)
    Hp = _round_up(H, tn)
    Dp = _round_up(D, tk)

    # bf16 matmul operands (f32 MXU accumulation), f32 epilogue.
    x_p = jnp.zeros((Bp, Dp), jnp.bfloat16).at[:B, :D].set(x2d.astype(jnp.bfloat16))
    w_p = jnp.zeros((Hp, Dp), jnp.bfloat16).at[:H, :D].set(w1.astype(jnp.bfloat16))
    # Padded output columns get +inf threshold -> spike 0 (sliced off anyway).
    thr_p = jnp.full((1, Hp), jnp.inf, jnp.float32).at[0, :H].set(thr)

    grid = (Bp // tm, Hp // tn, Dp // tk)

    cost = pl.CostEstimate(
        flops=2 * Bp * Dp * Hp,
        bytes_accessed=int(x_p.size) * 2 + int(w_p.size) * 2
        + int(thr_p.size) * 4 + Bp * Hp * 4,
        transcendentals=0,
    )

    out = pl.pallas_call(
        _linear_lif_kernel,
        out_shape=jax.ShapeDtypeStruct((Bp, Hp), jnp.float32),
        grid_spec=pltpu.PrefetchScalarGridSpec(
            num_scalar_prefetch=0,
            grid=grid,
            in_specs=[
                pl.BlockSpec((tm, tk), lambda i, j, k: (i, k)),   # x tile
                pl.BlockSpec((tn, tk), lambda i, j, k: (j, k)),   # w tile (H, D)
                pl.BlockSpec((1, tn), lambda i, j, k: (0, j)),    # threshold row
            ],
            out_specs=pl.BlockSpec((tm, tn), lambda i, j, k: (i, j)),
            scratch_shapes=[pltpu.VMEM((tm, tn), jnp.float32)],
        ),
        compiler_params=pltpu.CompilerParams(
            dimension_semantics=("parallel", "parallel", "arbitrary"),
            vmem_limit_bytes=32 * 1024 * 1024,
        ),
        cost_estimate=cost,
    )(x_p, w_p, thr_p)

    return out[:B, :H]


if __name__ == "__main__":
    # Module config (synthetic, deterministic):
    #   dim_input = 4*16*16 = 1024, num_hidden_units = [32]
    #   tau = 2.0, v_threshold = 1.0, v_reset = 0.0
    tau, v_threshold, v_reset = 2.0, 1.0, 0.0
    B, C, Hs, Ws = 2, 4, 16, 16
    dim_input = C * Hs * Ws
    hidden = 32

    key = jax.random.PRNGKey(0)
    kx, kw, kb = jax.random.split(key, 3)
    x = jax.random.normal(kx, (B, C, Hs, Ws), dtype=jnp.float32)
    # Sampled Bayesian weight (deterministic stand-in for sample_nn_weight):
    w1 = 0.05 * jax.random.normal(kw, (hidden, dim_input), dtype=jnp.float32)
    b1 = 0.1 * jax.random.normal(kb, (hidden,), dtype=jnp.float32)

    out = bayesian_linear_forward(
        x, w1, b1, tau=tau, v_threshold=v_threshold, v_reset=v_reset
    )
    out = jax.block_until_ready(out)
    assert out.shape == (B, hidden)

    # Reference with the same bf16 operand cast (matches MXU input precision);
    # ignore elements within a tiny band of the threshold to tolerate MXU vs XLA
    # accumulation-order differences (hard-threshold outputs can flip there).
    x2d = x.reshape(B, -1).astype(jnp.bfloat16).astype(jnp.float32)
    w_f = w1.astype(jnp.bfloat16).astype(jnp.float32)
    z_ref = x2d @ w_f.T
    thr = (v_threshold - v_reset) * tau - b1
    spikes_ref = (z_ref >= thr[None, :]).astype(jnp.float32)
    near_threshold = jnp.abs(z_ref - thr[None, :]) < 1e-3
    assert bool(jnp.all((out == spikes_ref) | near_threshold)), (
        "Pallas output mismatch vs reference"
    )

    print("KERNEL_OK")
</pallas_src>

<mosaic_0001>
module attributes {stable_mosaic.version = 11 : i64} {
  func.func @_linear_lif_kernel(%arg0: i32, %arg1: i32, %arg2: i32, %arg3: memref<8x512xbf16, #tpu.memory_space<vmem>>, %arg4: memref<128x512xbf16, #tpu.memory_space<vmem>>, %arg5: memref<1x128xf32, #tpu.memory_space<vmem>>, %arg6: memref<8x128xf32, #tpu.memory_space<vmem>>, %arg7: memref<8x128xf32, #tpu.memory_space<vmem>>) attributes {dimension_semantics = [#tpu.dimension_semantics<parallel>, #tpu.dimension_semantics<parallel>, #tpu.dimension_semantics<arbitrary>], iteration_bounds = array<i64: 1, 1, 2>, scalar_prefetch = 0 : i64, scratch_operands = 1 : i64, tpu.core_type = #tpu.core_type<tc>, window_params = [{transform_indices = @transform_0, window_bounds = array<i64: 8, 512>}, {transform_indices = @transform_1, window_bounds = array<i64: 128, 512>}, {transform_indices = @transform_2, window_bounds = array<i64: 1, 128>}, {transform_indices = @transform_3, window_bounds = array<i64: 8, 128>}]} {
    %c0_i32 = arith.constant 0 : i32
    %0 = arith.cmpi eq, %arg2, %c0_i32 : i32
    %1 = arith.extui %0 : i1 to i32
    %c0_i32_0 = arith.constant 0 : i32
    %2 = arith.cmpi ne, %1, %c0_i32_0 : i32
    scf.if %2 {
      %cst_9 = arith.constant 0.000000e+00 : f32
      %12 = vector.broadcast %cst_9 : f32 to vector<8x128xf32>
      %c0_10 = arith.constant 0 : index
      %c0_11 = arith.constant 0 : index
      %13 = vector.load %arg7[%c0_10, %c0_11] : memref<8x128xf32, #tpu.memory_space<vmem>>, vector<8x128xf32>
      tpu.vector_store %arg7[%c0_10, %c0_11], %12 {strides = array<i32>} : memref<8x128xf32, #tpu.memory_space<vmem>>, vector<8x128xf32>,
    } else {
    }
    %c0 = arith.constant 0 : index
    %c0_1 = arith.constant 0 : index
    %3 = vector.load %arg7[%c0, %c0_1] : memref<8x128xf32, #tpu.memory_space<vmem>>, vector<8x128xf32>
    %c0_2 = arith.constant 0 : index
    %c0_3 = arith.constant 0 : index
    %4 = vector.load %arg3[%c0_2, %c0_3] : memref<8x512xbf16, #tpu.memory_space<vmem>>, vector<8x512xbf16>
    %c0_4 = arith.constant 0 : index
    %c0_5 = arith.constant 0 : index
    %5 = vector.load %arg4[%c0_4, %c0_5] : memref<128x512xbf16, #tpu.memory_space<vmem>>, vector<128x512xbf16>
    %cst = arith.constant dense<0.000000e+00> : vector<8x128xf32>
    %6 = tpu.matmul %4, %5, %cst {dimension_numbers = #tpu.dot_dimension_numbers<[1], [1], [0], [0], [0, 0, 1, 0], [], []>} : vector<8x512xbf16>, vector<128x512xbf16>, vector<8x128xf32> -> vector<8x128xf32>
    %7 = arith.addf %3, %6 : vector<8x128xf32>
    %c0_6 = arith.constant 0 : index
    %c0_7 = arith.constant 0 : index
    %8 = vector.load %arg7[%c0_6, %c0_7] : memref<8x128xf32, #tpu.memory_space<vmem>>, vector<8x128xf32>
    tpu.vector_store %arg7[%c0_6, %c0_7], %7 {strides = array<i32>} : memref<8x128xf32, #tpu.memory_space<vmem>>, vector<8x128xf32>,
    %c1_i32 = arith.constant 1 : i32
    %9 = arith.cmpi eq, %arg2, %c1_i32 : i32
    %10 = arith.extui %9 : i1 to i32
    %c0_i32_8 = arith.constant 0 : i32
    %11 = arith.cmpi ne, %10, %c0_i32_8 : i32
    scf.if %11 {
      %c0_9 = arith.constant 0 : index
      %c0_10 = arith.constant 0 : index
      %12 = vector.load %arg7[%c0_9, %c0_10] : memref<8x128xf32, #tpu.memory_space<vmem>>, vector<8x128xf32>
      %c0_11 = arith.constant 0 : index
      %c0_12 = arith.constant 0 : index
      %13 = vector.load %arg5[%c0_11, %c0_12] : memref<1x128xf32, #tpu.memory_space<vmem>>, vector<1x128xf32>
      %14 = vector.broadcast %13 : vector<1x128xf32> to vector<8x128xf32>
      %15 = arith.cmpf oge, %12, %14 : vector<8x128xf32>
      %16 = arith.extui %15 : vector<8x128xi1> to vector<8x128xi32>
      %17 = arith.sitofp %16 : vector<8x128xi32> to vector<8x128xf32>
      %c0_13 = arith.constant 0 : index
      %c0_14 = arith.constant 0 : index
      %18 = vector.load %arg6[%c0_13, %c0_14] : memref<8x128xf32, #tpu.memory_space<vmem>>, vector<8x128xf32>
      tpu.vector_store %arg6[%c0_13, %c0_14], %17 {strides = array<i32>} : memref<8x128xf32, #tpu.memory_space<vmem>>, vector<8x128xf32>,
    } else {
    }
    return
  }
  func.func @transform_0(%arg0: i32, %arg1: i32, %arg2: i32) -> (i32, i32) {
    %c0_i32 = arith.constant 0 : i32
    return %arg0, %arg2 : i32, i32
  }
  func.func @transform_1(%arg0: i32, %arg1: i32, %arg2: i32) -> (i32, i32) {
    %c0_i32 = arith.constant 0 : i32
    return %arg1, %arg2 : i32, i32
  }
  func.func @transform_2(%arg0: i32, %arg1: i32, %arg2: i32) -> (i32, i32) {
    %c0_i32 = arith.constant 0 : i32
    %c0_i32_0 = arith.constant 0 : i32
    return %c0_i32, %arg1 : i32, i32
  }
  func.func @transform_3(%arg0: i32, %arg1: i32, %arg2: i32) -> (i32, i32) {
    %c0_i32 = arith.constant 0 : i32
    return %arg0, %arg1 : i32, i32
  }
}

</mosaic_0001>

<llo_original>
// kernel: tpu_custom_call.1
$region0: #{tpu_custom_call.1}
  #allocation0 [shape = 'u32[]', space=smem, size = 0x4, offset = 0x4, fixed_abs, tag = 'smem constant byte address 0x4 - core index']
  #allocation1 [shape = 'u32[144,128]{1,0:T(1,128)}', space=vmem, size = 0x12000, scoped, tag = 'internal scratch']
  #allocation2 [shape = 'f32[8,128]{1,0:T(8,128)}', space=vmem, size = 0x1000, scoped, tag = 'scratch operand']
  %s0 = inlined_call_operand.hbm [shape: bf16[8,1024], index: 0, kind: input, shape index: {}]
  %s1 = inlined_call_operand.hbm [shape: bf16[128,1024], index: 1, kind: input, shape index: {}]
  %s2 = inlined_call_operand.vmem [shape: f32[1,128], index: 2, kind: input, shape index: {}]
  %s3 = inlined_call_operand.hbm [shape: f32[8,128], index: 3, kind: output, shape index: {}]
  %s4 = sld [smem:[#allocation0]]
  $region61: #{tpu_custom_call.1} parent=0
    _
  %s6 = ssub.s32 1, %s4
  %s7 = scalar_select 0, %s6, %s4
  $region1: #{tpu_custom_call.1} parent=0
    #allocation3 [shape = 'u8[16384]{0}', space=vmem, size = 0x4000, scoped, tag = 'input window, operand 0']
    #allocation4 [shape = 's32[2]{0}', space=sflag, size = 0x8, scoped, tag = 'scoped memory for tpu_custom_call.1']
    #allocation5 [shape = 's32[2]{0}', space=sflag, size = 0x8, scoped, tag = 'scoped memory for tpu_custom_call.1']
    #allocation6 [shape = 'u8[262144]{0}', space=vmem, size = 0x40000, scoped, tag = 'input window, operand 1']
    #allocation7 [shape = 's32[2]{0}', space=sflag, size = 0x8, scoped, tag = 'scoped memory for tpu_custom_call.1']
    #allocation8 [shape = 'u8[4096]{0}', space=vmem, size = 0x1000, scoped, tag = 'output window, operand 0, single buffered']
    %8 = vsyncpa [#allocation4], 0
    %s9 = scalar_lea.sflag [#allocation4], 1
    %10 = vsyncpa %s9, 0
    %11 = vsyncpa [#allocation7], 0
    %s12 = scalar_lea.sflag [#allocation7], 1
    %13 = vsyncpa %s12, 0
    %14 = vsyncpa [#allocation5], 0
    loop: start=0, step=1, limit=4
    $region2: #{tpu_custom_call.1} parent=1 // loop_pre_header
      _
    $region3: #{tpu_custom_call.1} parent=1 // loop_header
      %s16 = sphi 0, %s20
      %p17 = scmp.ge.s32.totalorder %s16, 4
      %s23 = sphi 0, %s42
      %s24 = sphi 0, %s38
      %s25 = sphi 0, %s34
      %s26 = sphi 0, %s23
      %s27 = sphi 0, %s24
      %s28 = sphi 0, %s25
      %s29 = sphi 0, %s26
      %s30 = sphi 0, %s27
      %s31 = sphi 0, %s28
      %s47 = sphi 0, %s49
      %s50 = sphi 0, %s47
      %s51 = sphi 0, %s50
      %s67 = sphi 0, %s51
      %s75 = sphi 0, %s77
      %s78 = sphi 0, %s75
      %s79 = sphi 0, %s78
      %s95 = sphi 0, %s79
      %s101 = sphi 0, %s103
      %s104 = sphi 0, %s101
      %s105 = sphi 0, %s104
      %s121 = sphi 0, %s105
      %s129 = sphi 0, %s131
      %s132 = sphi 0, %s129
      %s133 = sphi 0, %s132
      %s149 = sphi 0, %s133
    $region4: #{tpu_custom_call.1} parent=1 // loop_header_branch
      %19 = sbr.rel (%p17) target = $region8
    $region5: #{tpu_custom_call.1} parent=1 // loop_body
      %s21 = ssub.s32 %s16, 1
      %s22 = ssub.s32 %s16, 2
      %s32 = sadd.s32 1, %s25
      %p33 = scmp.ge.s32.totalorder %s32, 2
      %s34 = scalar_select %p33, 0, %s32
      %s35 = sadd.s32 1, %s24
      %s36 = scalar_select %p33, %s35, %s24
      %p37 = scmp.ge.s32.totalorder %s36, 1
      %s38 = scalar_select %p37, 0, %s36
      %s39 = sadd.s32 1, %s23
      %s40 = scalar_select %p37, %s39, %s23
      %p41 = scmp.ge.s32.totalorder %s40, 1
      %s42 = scalar_select %p41, 0, %s40
      %s43 = ssub.s32 %s23, %s42
      %s44 = ssub.s32 %s25, %s34
      %s45 = sor.u32 %s43, %s44
      %p46 = scmp.eq.s32.totalorder %s45, 0
      %s48 = sadd.s32 %s47, 1
      %s49 = scalar_select %p46, %s47, %s48
      %p52 = pneg %p46
      %p53 = scmp.eq.s32.totalorder %s16, 1
      %p54 = por %p52, %p53
      %p55 = scmp.ne.s32.totalorder %s47, %s50
      %p56 = scmp.eq.s32.totalorder %s16, 0
      %p57 = por %p55, %p56
      %p58 = scmp.ne.s32.totalorder %s47, %s50
      %p59 = scmp.eq.s32.totalorder %s21, 1
      %p60 = por %p58, %p59
      %p61 = scmp.ne.s32.totalorder %s50, %s51
      %p62 = scmp.eq.s32.totalorder %s21, 0
      %p63 = por %p61, %p62
      %p64 = scmp.ne.s32.totalorder %s50, %s51
      %p65 = scmp.eq.s32.totalorder %s22, 1
      %p66 = por %p64, %p65
      %p68 = scmp.ne.s32.totalorder %s51, %s67
      %p69 = scmp.eq.s32.totalorder %s22, 0
      %p70 = por %p68, %p69
      %s71 = ssub.s32 %s24, %s38
      %s72 = ssub.s32 %s25, %s34
      %s73 = sor.u32 %s71, %s72
      %p74 = scmp.eq.s32.totalorder %s73, 0
      %s76 = sadd.s32 %s75, 1
      %s77 = scalar_select %p74, %s75, %s76
      %p80 = pneg %p74
      %p81 = scmp.eq.s32.totalorder %s16, 1
      %p82 = por %p80, %p81
      %p83 = scmp.ne.s32.totalorder %s75, %s78
      %p84 = scmp.eq.s32.totalorder %s16, 0
      %p85 = por %p83, %p84
      %p86 = scmp.ne.s32.totalorder %s75, %s78
      %p87 = scmp.eq.s32.totalorder %s21, 1
      %p88 = por %p86, %p87
      %p89 = scmp.ne.s32.totalorder %s78, %s79
      %p90 = scmp.eq.s32.totalorder %s21, 0
      %p91 = por %p89, %p90
      %p92 = scmp.ne.s32.totalorder %s78, %s79
      %p93 = scmp.eq.s32.totalorder %s22, 1
      %p94 = por %p92, %p93
      %p96 = scmp.ne.s32.totalorder %s79, %s95
      %p97 = scmp.eq.s32.totalorder %s22, 0
      %p98 = por %p96, %p97
      %s99 = ssub.s32 %s24, %s38
      %p100 = scmp.eq.s32.totalorder %s99, 0
      %s102 = sadd.s32 %s101, 1
      %s103 = scalar_select %p100, %s101, %s102
      %p106 = pneg %p100
      %p107 = scmp.eq.s32.totalorder %s16, 1
      %p108 = por %p106, %p107
      %p109 = scmp.ne.s32.totalorder %s101, %s104
      %p110 = scmp.eq.s32.totalorder %s16, 0
      %p111 = por %p109, %p110
      %p112 = scmp.ne.s32.totalorder %s101, %s104
      %p113 = scmp.eq.s32.totalorder %s21, 1
      %p114 = por %p112, %p113
      %p115 = scmp.ne.s32.totalorder %s104, %s105
      %p116 = scmp.eq.s32.totalorder %s21, 0
      %p117 = por %p115, %p116
      %p118 = scmp.ne.s32.totalorder %s104, %s105
      %p119 = scmp.eq.s32.totalorder %s22, 1
      %p120 = por %p118, %p119
      %p122 = scmp.ne.s32.totalorder %s105, %s121
      %p123 = scmp.eq.s32.totalorder %s22, 0
      %p124 = por %p122, %p123
      %s125 = ssub.s32 %s23, %s42
      %s126 = ssub.s32 %s24, %s38
      %s127 = sor.u32 %s125, %s126
      %p128 = scmp.eq.s32.totalorder %s127, 0
      %s130 = sadd.s32 %s129, 1
      %s131 = scalar_select %p128, %s129, %s130
      %p134 = pneg %p128
      %p135 = scmp.eq.s32.totalorder %s16, 1
      %p136 = por %p134, %p135
      %p137 = scmp.ne.s32.totalorder %s129, %s132
      %p138 = scmp.eq.s32.totalorder %s16, 0
      %p139 = por %p137, %p138
      %p140 = scmp.ne.s32.totalorder %s129, %s132
      %p141 = scmp.eq.s32.totalorder %s21, 1
      %p142 = por %p140, %p141
      %p143 = scmp.ne.s32.totalorder %s132, %s133
      %p144 = scmp.eq.s32.totalorder %s21, 0
      %p145 = por %p143, %p144
      %p146 = scmp.ne.s32.totalorder %s132, %s133
      %p147 = scmp.eq.s32.totalorder %s22, 1
      %p148 = por %p146, %p147
      %p150 = scmp.ne.s32.totalorder %s133, %s149
      %p151 = scmp.eq.s32.totalorder %s22, 0
      %p152 = por %p150, %p151
      %p153 = scmp.le.s32.totalorder 1, %s16
      %p154 = scmp.lt.s32.totalorder %s16, 3
      %p155 = pnand %p153, %p154
      %p156 = pneg %p155
      // Predicated region
      $region9: #{tpu_custom_call.1} parent=5 // pred_check
        _
      $region10: #{tpu_custom_call.1} parent=5 // pred_check_branch
        %158 = sbr.rel (%p155) target = $region12
      $region11: #{tpu_custom_call.1} parent=5 // pred_region
        %s159 = ssub.s32 %s16, 1
        // Predicated region
        $region13: #{tpu_custom_call.1} parent=11 // pred_check
          %p160 = pneg %p117
        $region14: #{tpu_custom_call.1} parent=11 // pred_check_branch
          %162 = sbr.rel (%p160) target = $region16
        $region15: #{tpu_custom_call.1} parent=11 // pred_region
          %p163 = scmp.lt.s32.totalorder %s27, 0
          %s164 = scalar_select %p163, %s27, 0
          %s165 = scalar_lea.vmem %s2, %s164
        $region16: #{tpu_custom_call.1} parent=11 // pred_fallthru
          _
      $region12: #{tpu_custom_call.1} parent=5 // pred_fallthru
        _
      %p166 = scmp.lt.s32.totalorder %s16, 2
      // Predicated region
      $region17: #{tpu_custom_call.1} parent=5 // pred_check
        %p167 = pneg %p166
      $region18: #{tpu_custom_call.1} parent=5 // pred_check_branch
        %169 = sbr.rel (%p167) target = $region20
      $region19: #{tpu_custom_call.1} parent=5 // pred_region
        // Predicated region
        $region21: #{tpu_custom_call.1} parent=19 // pred_check
          %p170 = pneg %p57
        $region22: #{tpu_custom_call.1} parent=19 // pred_check_branch
          %172 = sbr.rel (%p170) target = $region24
        $region23: #{tpu_custom_call.1} parent=19 // pred_region
          %s173 = sand.u32 %s47, 1
          %s174 = scalar_lea.sflag [#allocation4], %s173
          %s175 = sand.u32 %s47, 1
          %s176 = smul.addr %s175, 16
          %s177 = scalar_lea.vmem [#allocation3], %s176
          %s178 = smul.u32 4, %s25
          %s180 = ssub.s32 256, 256
          %181 = vsyncadd %s174, %s180
          %s182 = smul.addr %s23, 8
          %s183 = sadd.s32 %s178, %s182
          %s184 = smul.addr %s183, 64
          %s185 = scalar_lea.hbm %s0, %s184
          %s187 = sshll.u32 %s177, 4
          %s188 = int_to_ptr.vmem [resolvable:$true] %s187
          %190 = dma.hbm_to_vmem [thread:$0]  %s185, 256, %s188, %s174
        $region24: #{tpu_custom_call.1} parent=19 // pred_fallthru
          _
        // Predicated region
        $region25: #{tpu_custom_call.1} parent=19 // pred_check
          %p191 = pneg %p85
        $region26: #{tpu_custom_call.1} parent=19 // pred_check_branch
          %193 = sbr.rel (%p191) target = $region28
        $region27: #{tpu_custom_call.1} parent=19 // pred_region
          %s194 = sand.u32 %s75, 1
          %s195 = scalar_lea.sflag [#allocation7], %s194
          %s196 = sand.u32 %s75, 1
          %s197 = smul.addr %s196, 256
          %s198 = scalar_lea.vmem [#allocation6], %s197
          %s199 = smul.u32 16, %s24
          %s200 = smul.u32 4, %s25
          %s202 = ssub.s32 4096, 4096
          %203 = vsyncadd %s195, %s202
          %s204 = smul.addr %s199, 8
          %s205 = sadd.s32 %s200, %s204
          %s206 = smul.addr %s205, 64
          %s207 = scalar_lea.hbm %s1, %s206
          %s208 = sshll.u32 %s198, 4
          %s209 = int_to_ptr.vmem [resolvable:$true] %s208
          %214 = dma.hbm_to_vmem [thread:$0]  %s207, 4096, %s209, %s195, 512, 256, 16
        $region28: #{tpu_custom_call.1} parent=19 // pred_fallthru
          _
      $region20: #{tpu_custom_call.1} parent=5 // pred_fallthru
        _
      %p215 = scmp.le.s32.totalorder 1, %s16
      %p216 = scmp.lt.s32.totalorder %s16, 3
      %p217 = pnand %p215, %p216
      %p218 = pneg %p217
      // Predicated region
      $region29: #{tpu_custom_call.1} parent=5 // pred_check
        _
      $region30: #{tpu_custom_call.1} parent=5 // pred_check_branch
        %220 = sbr.rel (%p217) target = $region32
      $region31: #{tpu_custom_call.1} parent=5 // pred_region
        %s221 = ssub.s32 %s16, 1
        %s222 = sand.u32 %s50, 1
        %s223 = scalar_lea.sflag [#allocation4], %s222
        %s224 = sand.u32 %s50, 1
        %s225 = smul.addr %s224, 16
        %s226 = scalar_lea.vmem [#allocation3], %s225
        // Predicated region
        $region33: #{tpu_custom_call.1} parent=31 // pred_check
          %p227 = pneg %p63
        $region34: #{tpu_custom_call.1} parent=31 // pred_check_branch
          %229 = sbr.rel (%p227) target = $region36
        $region35: #{tpu_custom_call.1} parent=31 // pred_region
          %230 = dma.done %s223, 256
        $region36: #{tpu_custom_call.1} parent=31 // pred_fallthru
          _
        %s231 = sand.u32 %s78, 1
        %s232 = scalar_lea.sflag [#allocation7], %s231
        %s233 = sand.u32 %s78, 1
        %s234 = smul.addr %s233, 256
        %s235 = scalar_lea.vmem [#allocation6], %s234
        // Predicated region
        $region37: #{tpu_custom_call.1} parent=31 // pred_check
          %p236 = pneg %p91
        $region38: #{tpu_custom_call.1} parent=31 // pred_check_branch
          %238 = sbr.rel (%p236) target = $region40
        $region39: #{tpu_custom_call.1} parent=31 // pred_region
          %239 = dma.done %s232, 4096
        $region40: #{tpu_custom_call.1} parent=31 // pred_fallthru
          _
        %s240 = sand.u32 %s50, 1
        %s241 = scalar_lea.sflag [#allocation4], %s240
        %s242 = sand.u32 %s50, 1
        %s243 = smul.addr %s242, 16
        %s244 = scalar_lea.vmem [#allocation3], %s243
        %p245 = pneg %p63
        %p246 = pneg %p60
        %s247 = sand.u32 %s78, 1
        %s248 = scalar_lea.sflag [#allocation7], %s247
        %s249 = sand.u32 %s78, 1
        %s250 = smul.addr %s249, 256
        %s251 = scalar_lea.vmem [#allocation6], %s250
        %p252 = pneg %p91
        %p253 = pneg %p88
        %p254 = scmp.lt.s32.totalorder %s27, 0
        %s255 = scalar_select %p254, %s27, 0
        %s256 = scalar_lea.vmem %s2, %s255
        %p257 = pneg %p117
        %p258 = pneg %p114
        %p259 = pneg %p145
        %p260 = pneg %p142
        %s261 = smul.u32 4, %s28
        %s262 = smul.u32 16, %s27
        %s263 = smul.u32 4, %s28
        %p264 = scmp.lt.s32.totalorder %s27, 0
        %s265 = scalar_select %p264, %s27, 0
        %s266 = scalar_lea.vmem %s2, %s265
        %p268 = scmp.eq.s32.totalorder %s28, 0
        // Predicated region
        $region41: #{tpu_custom_call.1} parent=31 // pred_check
          %p269 = pneg %p268
        $region42: #{tpu_custom_call.1} parent=31 // pred_check_branch
          %271 = sbr.rel (%p269) target = $region44
        $region43: #{tpu_custom_call.1} parent=31 // pred_region
          %272 = vst [vmem:[#allocation2] sm:$0xff] 0.0
        $region44: #{tpu_custom_call.1} parent=31 // pred_fallthru
          _
        %v273 = vld [vmem:[#allocation2] sm:$0xff]
        %v274 = vld [vmem:[%s226] sm:$0xff]
        %v275 = vld [vmem:[%s226 + $0x8] sm:$0xff]
        %v276 = vld [vmem:[%s235] sm:$0xff]
        %v277 = vld [vmem:[%s235 + $0x8] sm:$0xff]
        %v278 = vld [vmem:[%s235 + $0x10] sm:$0xff]
        %v279 = vld [vmem:[%s235 + $0x18] sm:$0xff]
        %v280 = vld [vmem:[%s235 + $0x20] sm:$0xff]
        %v281 = vld [vmem:[%s235 + $0x28] sm:$0xff]
        %v282 = vld [vmem:[%s235 + $0x30] sm:$0xff]
        %v283 = vld [vmem:[%s235 + $0x38] sm:$0xff]
        %v284 = vld [vmem:[%s235 + $0x40] sm:$0xff]
        %v285 = vld [vmem:[%s235 + $0x48] sm:$0xff]
        %v286 = vld [vmem:[%s235 + $0x50] sm:$0xff]
        %v287 = vld [vmem:[%s235 + $0x58] sm:$0xff]
        %v288 = vld [vmem:[%s235 + $0x60] sm:$0xff]
        %v289 = vld [vmem:[%s235 + $0x68] sm:$0xff]
        %v290 = vld [vmem:[%s235 + $0x70] sm:$0xff]
        %v291 = vld [vmem:[%s235 + $0x78] sm:$0xff]
        %v292 = vld [vmem:[%s235 + $0x80] sm:$0xff]
        %v293 = vld [vmem:[%s235 + $0x88] sm:$0xff]
        %v294 = vld [vmem:[%s235 + $0x90] sm:$0xff]
        %v295 = vld [vmem:[%s235 + $0x98] sm:$0xff]
        %v296 = vld [vmem:[%s235 + $0xa0] sm:$0xff]
        %v297 = vld [vmem:[%s235 + $0xa8] sm:$0xff]
        %v298 = vld [vmem:[%s235 + $0xb0] sm:$0xff]
        %v299 = vld [vmem:[%s235 + $0xb8] sm:$0xff]
        %v300 = vld [vmem:[%s235 + $0xc0] sm:$0xff]
        %v301 = vld [vmem:[%s235 + $0xc8] sm:$0xff]
        %v302 = vld [vmem:[%s235 + $0xd0] sm:$0xff]
        %v303 = vld [vmem:[%s235 + $0xd8] sm:$0xff]
        %v304 = vld [vmem:[%s235 + $0xe0] sm:$0xff]
        %v305 = vld [vmem:[%s235 + $0xe8] sm:$0xff]
        %v306 = vld [vmem:[%s235 + $0xf0] sm:$0xff]
        %v307 = vld [vmem:[%s235 + $0xf8] sm:$0xff]
        %v310 = vunpack.c.l.b16 %v274
        %v311 = vunpack.c.h.b16 %v274
        %v312 = vunpack.c.l.b16 %v275
        %v313 = vunpack.c.h.b16 %v275
        %v314 = vpack.c.b16 %v310, %v310
        %v315 = vpack.c.b16 %v311, %v311
        %v316 = vpack.c.b16 %v312, %v312
        %v317 = vpack.c.b16 %v313, %v313
        %v354 = vunpack.c.l.b16 %v276
        %v355 = vunpack.c.h.b16 %v276
        %v356 = vunpack.c.l.b16 %v277
        %v357 = vunpack.c.h.b16 %v277
        %v358 = vunpack.c.l.b16 %v278
        %v359 = vunpack.c.h.b16 %v278
        %v360 = vunpack.c.l.b16 %v279
        %v361 = vunpack.c.h.b16 %v279
        %v362 = vunpack.c.l.b16 %v280
        %v363 = vunpack.c.h.b16 %v280
        %v364 = vunpack.c.l.b16 %v281
        %v365 = vunpack.c.h.b16 %v281
        %v366 = vunpack.c.l.b16 %v282
        %v367 = vunpack.c.h.b16 %v282
        %v368 = vunpack.c.l.b16 %v283
        %v369 = vunpack.c.h.b16 %v283
        %v370 = vunpack.c.l.b16 %v284
        %v371 = vunpack.c.h.b16 %v284
        %v372 = vunpack.c.l.b16 %v285
        %v373 = vunpack.c.h.b16 %v285
        %v374 = vunpack.c.l.b16 %v286
        %v375 = vunpack.c.h.b16 %v286
        %v376 = vunpack.c.l.b16 %v287
        %v377 = vunpack.c.h.b16 %v287
        %v378 = vunpack.c.l.b16 %v288
        %v379 = vunpack.c.h.b16 %v288
        %v380 = vunpack.c.l.b16 %v289
        %v381 = vunpack.c.h.b16 %v289
        %v382 = vunpack.c.l.b16 %v290
        %v383 = vunpack.c.h.b16 %v290
        %v384 = vunpack.c.l.b16 %v291
        %v385 = vunpack.c.h.b16 %v291
        %v386 = vunpack.c.l.b16 %v292
        %v387 = vunpack.c.h.b16 %v292
        %v388 = vunpack.c.l.b16 %v293
        %v389 = vunpack.c.h.b16 %v293
        %v390 = vunpack.c.l.b16 %v294
        %v391 = vunpack.c.h.b16 %v294
        %v392 = vunpack.c.l.b16 %v295
        %v393 = vunpack.c.h.b16 %v295
        %v394 = vunpack.c.l.b16 %v296
        %v395 = vunpack.c.h.b16 %v296
        %v396 = vunpack.c.l.b16 %v297
        %v397 = vunpack.c.h.b16 %v297
        %v398 = vunpack.c.l.b16 %v298
        %v399 = vunpack.c.h.b16 %v298
        %v400 = vunpack.c.l.b16 %v299
        %v401 = vunpack.c.h.b16 %v299
        %v402 = vunpack.c.l.b16 %v300
        %v403 = vunpack.c.h.b16 %v300
        %v404 = vunpack.c.l.b16 %v301
        %v405 = vunpack.c.h.b16 %v301
        %v406 = vunpack.c.l.b16 %v302
        %v407 = vunpack.c.h.b16 %v302
        %v408 = vunpack.c.l.b16 %v303
        %v409 = vunpack.c.h.b16 %v303
        %v410 = vunpack.c.l.b16 %v304
        %v411 = vunpack.c.h.b16 %v304
        %v412 = vunpack.c.l.b16 %v305
        %v413 = vunpack.c.h.b16 %v305
        %v414 = vunpack.c.l.b16 %v306
        %v415 = vunpack.c.h.b16 %v306
        %v416 = vunpack.c.l.b16 %v307
        %v417 = vunpack.c.h.b16 %v307
        %v418 = vpack.c.b16 %v358, %v354
        %v419 = vpack.c.b16 %v359, %v355
        %v420 = vpack.c.b16 %v360, %v356
        %v421 = vpack.c.b16 %v361, %v357
        %v422 = vpack.c.b16 %v366, %v362
        %v423 = vpack.c.b16 %v367, %v363
        %v424 = vpack.c.b16 %v368, %v364
        %v425 = vpack.c.b16 %v369, %v365
        %v426 = vpack.c.b16 %v374, %v370
        %v427 = vpack.c.b16 %v375, %v371
        %v428 = vpack.c.b16 %v376, %v372
        %v429 = vpack.c.b16 %v377, %v373
        %v430 = vpack.c.b16 %v382, %v378
        %v431 = vpack.c.b16 %v383, %v379
        %v432 = vpack.c.b16 %v384, %v380
        %v433 = vpack.c.b16 %v385, %v381
        %v434 = vpack.c.b16 %v390, %v386
        %v435 = vpack.c.b16 %v391, %v387
        %v436 = vpack.c.b16 %v392, %v388
        %v437 = vpack.c.b16 %v393, %v389
        %v438 = vpack.c.b16 %v398, %v394
        %v439 = vpack.c.b16 %v399, %v395
        %v440 = vpack.c.b16 %v400, %v396
        %v441 = vpack.c.b16 %v401, %v397
        %v442 = vpack.c.b16 %v406, %v402
        %v443 = vpack.c.b16 %v407, %v403
        %v444 = vpack.c.b16 %v408, %v404
        %v445 = vpack.c.b16 %v409, %v405
        %v446 = vpack.c.b16 %v414, %v410
        %v447 = vpack.c.b16 %v415, %v411
        %v448 = vpack.c.b16 %v416, %v412
        %v449 = vpack.c.b16 %v417, %v413
        %482 = vmatprep.subr.bf16.mxu0 %v447
        %483 = vmatpush1.bf16.xpose.msra.mxu0 %v446
        %484 = vmatprep.subr.bf16.mxu0 %v443
        %485 = vmatpush1.bf16.xpose.msra.mxu0 %v442
        %486 = vmatprep.subr.bf16.mxu0 %v439
        %487 = vmatpush1.bf16.xpose.msra.mxu0 %v438
        %488 = vmatprep.subr.bf16.mxu0 %v435
        %489 = vmatpush1.bf16.xpose.msra.mxu0 %v434
        %490 = vmatprep.subr.bf16.mxu0 %v431
        %491 = vmatpush1.bf16.xpose.msra.mxu0 %v430
        %492 = vmatprep.subr.bf16.mxu0 %v427
        %493 = vmatpush1.bf16.xpose.msra.mxu0 %v426
        %494 = vmatprep.subr.bf16.mxu0 %v423
        %495 = vmatpush1.bf16.xpose.msra.mxu0 %v422
        %496 = vmatprep.subr.bf16.mxu0 %v419
        %497 = vmatpush1.bf16.xpose.msra.mxu0 %v418
        %498 = vmatprep.subr.bf16.mxu0 0
        %499 = vmatpush2.bf16.xpose.msra.mxu0 0
        %500 = vmatprep.subr.bf16.mxu0 0
        %501 = vmatpush2.bf16.xpose.msra.mxu0 0
        %502 = vmatprep.subr.bf16.mxu0 0
        %503 = vmatpush2.bf16.xpose.msra.mxu0 0
        %504 = vmatprep.subr.bf16.mxu0 0
        %505 = vmatpush2.bf16.xpose.msra.mxu0 0
        %506 = vmatprep.subr.bf16.mxu0 0
        %507 = vmatpush2.bf16.xpose.msra.mxu0 0
        %508 = vmatprep.subr.bf16.mxu0 0
        %509 = vmatpush2.bf16.xpose.msra.mxu0 0
        %510 = vmatprep.subr.bf16.mxu0 0
        %511 = vmatpush2.bf16.xpose.msra.mxu0 0
        %512 = vmatprep.subr.bf16.mxu0 0
        %513 = vmatpush2.bf16.xpose.msra.mxu0 0
        %514 = vmatprep.mubr.bf16.mxu0 %v315
        %515 = vmatmul.mubr.bf16.gmra.mxu0 %v314
        %v516 = vpop.f32.mrf.mxu0
        %v517 = vadd.f32 0.0, %v516
        %v518 = vpop.f32.mrf.mxu0
        %v519 = vpop.f32.mrf.mxu0
        %v520 = vpop.f32.mrf.mxu0
        %521 = vdwg.mxu0
        %522 = vmatprep.subr.bf16.mxu0 %v449
        %523 = vmatpush1.bf16.xpose.msra.mxu0 %v448
        %524 = vmatprep.subr.bf16.mxu0 %v445
        %525 = vmatpush1.bf16.xpose.msra.mxu0 %v444
        %526 = vmatprep.subr.bf16.mxu0 %v441
        %527 = vmatpush1.bf16.xpose.msra.mxu0 %v440
        %528 = vmatprep.subr.bf16.mxu0 %v437
        %529 = vmatpush1.bf16.xpose.msra.mxu0 %v436
        %530 = vmatprep.subr.bf16.mxu0 %v433
        %531 = vmatpush1.bf16.xpose.msra.mxu0 %v432
        %532 = vmatprep.subr.bf16.mxu0 %v429
        %533 = vmatpush1.bf16.xpose.msra.mxu0 %v428
        %534 = vmatprep.subr.bf16.mxu0 %v425
        %535 = vmatpush1.bf16.xpose.msra.mxu0 %v424
        %536 = vmatprep.subr.bf16.mxu0 %v421
        %537 = vmatpush1.bf16.xpose.msra.mxu0 %v420
        %538 = vmatprep.subr.bf16.mxu0 0
        %539 = vmatpush2.bf16.xpose.msra.mxu0 0
        %540 = vmatprep.subr.bf16.mxu0 0
        %541 = vmatpush2.bf16.xpose.msra.mxu0 0
        %542 = vmatprep.subr.bf16.mxu0 0
        %543 = vmatpush2.bf16.xpose.msra.mxu0 0
        %544 = vmatprep.subr.bf16.mxu0 0
        %545 = vmatpush2.bf16.xpose.msra.mxu0 0
        %546 = vmatprep.subr.bf16.mxu0 0
        %547 = vmatpush2.bf16.xpose.msra.mxu0 0
        %548 = vmatprep.subr.bf16.mxu0 0
        %549 = vmatpush2.bf16.xpose.msra.mxu0 0
        %550 = vmatprep.subr.bf16.mxu0 0
        %551 = vmatpush2.bf16.xpose.msra.mxu0 0
        %552 = vmatprep.subr.bf16.mxu0 0
        %553 = vmatpush2.bf16.xpose.msra.mxu0 0
        %554 = vmatprep.mubr.bf16.mxu0 %v317
        %555 = vmatmul.mubr.bf16.gmra.mxu0 %v316
        %v556 = vpop.f32.mrf.mxu0
        %v557 = vadd.f32 %v517, %v556
        %v558 = vpop.f32.mrf.mxu0
        %v559 = vpop.f32.mrf.mxu0
        %v560 = vpop.f32.mrf.mxu0
        %561 = vdwg.mxu0
        %v562 = vadd.f32 %v273, %v557
        %563 = vst [vmem:[#allocation2] sm:$0xff] %v562
        %p564 = scmp.eq.s32.totalorder %s28, 1
        // Predicated region
        $region45: #{tpu_custom_call.1} parent=31 // pred_check
          %p565 = pneg %p564
        $region46: #{tpu_custom_call.1} parent=31 // pred_check_branch
          %567 = sbr.rel (%p565) target = $region48
        $region47: #{tpu_custom_call.1} parent=31 // pred_region
          %v568 = vld [vmem:[#allocation2] sm:$0xff]
          %v569 = vld [vmem:[%s266] sm:$0x1]
          %v571 = vlaneseq
          %v572 = vshrl.u32 %v571, 7
          %v573 = vsub.s32 0, %v572
          %v574 = vrot.slane %v569, %v573
          %vm576 = vcmp.ge.f32.partialorder %v568, %v574
          %v577 = vsel %vm576, 1, 0
          %v578 = vcvt.s32.f32 %v577
          %579 = vst [vmem:[#allocation8] sm:$0xff] %v578
        $region48: #{tpu_custom_call.1} parent=31 // pred_fallthru
          _
        // Predicated region
        $region49: #{tpu_custom_call.1} parent=31 // pred_check
          %p580 = pneg %p142
        $region50: #{tpu_custom_call.1} parent=31 // pred_check_branch
          %582 = sbr.rel (%p580) target = $region52
        $region51: #{tpu_custom_call.1} parent=31 // pred_region
          %s584 = ssub.s32 128, 128
          %585 = vsyncadd [#allocation5], %s584
          %s586 = sadd.s32 %s27, %s26
          %s587 = smul.addr %s586, 128
          %s588 = scalar_lea.hbm %s3, %s587
          %s590 = sshll.u32 [#allocation8], 4
          %s591 = int_to_ptr.vmem [resolvable:$true] %s590
          %593 = dma.vmem_to_hbm [thread:$0]  %s591, 128, %s588, [#allocation5]
        $region52: #{tpu_custom_call.1} parent=31 // pred_fallthru
          _
        // Predicated region
        $region53: #{tpu_custom_call.1} parent=31 // pred_check
          %p594 = pneg %p142
        $region54: #{tpu_custom_call.1} parent=31 // pred_check_branch
          %596 = sbr.rel (%p594) target = $region56
        $region55: #{tpu_custom_call.1} parent=31 // pred_region
          %597 = dma.done [#allocation5], 128
        $region56: #{tpu_custom_call.1} parent=31 // pred_fallthru
          _
      $region32: #{tpu_custom_call.1} parent=5 // pred_fallthru
        _
      %p598 = scmp.le.s32.totalorder 2, %s16
      // Predicated region
      $region57: #{tpu_custom_call.1} parent=5 // pred_check
        %p599 = pneg %p598
      $region58: #{tpu_custom_call.1} parent=5 // pred_check_branch
        %601 = sbr.rel (%p599) target = $region60
      $region59: #{tpu_custom_call.1} parent=5 // pred_region
        %s602 = ssub.s32 %s16, 2
      $region60: #{tpu_custom_call.1} parent=5 // pred_fallthru
        _
    $region6: #{tpu_custom_call.1} parent=1 // loop_footer
      %s20 = sadd.s32 1, %s16
    $region7: #{tpu_custom_call.1} parent=1 // loop_footer_branch
      %15 = sbr.rel target = $region3
    $region8: #{tpu_custom_call.1} parent=1 // loop_exit
      _
    %603 = vsyncpa [#allocation4], 1
    %s604 = scalar_lea.sflag [#allocation4], 1
    %605 = vsyncpa %s604, 1
    %606 = vsyncpa [#allocation7], 1
    %s607 = scalar_lea.sflag [#allocation7], 1
    %608 = vsyncpa %s607, 1
    %609 = vsyncpa [#allocation5], 1
    %s610 = scalar_lea.sflag [#allocation5], 1
    %611 = vsyncpa %s610, 1

</llo_original>
